<compile_context>
chip_gen: v5e
topology: v5e:2x2
jax: 0.10.0
libtpu: 0.0.40
codegen_flags: <defaults>
</compile_context>

<pallas_src>
import numpy as np
import jax
import jax.numpy as jnp
from jax.experimental import pallas as pl
from jax.experimental.pallas import tpu as pltpu


# ----------------------------- Pallas kernel --------------------------------
def _fused_mod_kernel(w_ref, b_ref, q_ref, o_ref):
    # w_ref: (K*C, C)         fused 1x1-conv weights, bf16, VMEM-resident
    # b_ref: (K*C, 1)         fused biases, f32, VMEM-resident
    # q_ref: (C, lane_tile)   RoI query features (rois x spatial on lanes), bf16
    # o_ref: (K*C, lane_tile) bf16 (f32 accumulate, bf16 writeback)
    acc = jnp.dot(w_ref[...], q_ref[...], preferred_element_type=jnp.float32)
    o_ref[...] = (acc + b_ref[...]).astype(o_ref.dtype)


def fpn_modulate(queries, weights, biases, max_lane_tile=1024):
    """Apply all featmap_num 1x1 convs to every RoI query in one pallas_call.

    queries : [N, C, P, P]  (RoIAlign output)
    weights : [K, C, C]     (stacked 1x1 conv weights, [k, out_ch, in_ch])
    biases  : [K, C]
    returns : bf16 array of shape (K*C, padded_lanes); column n*P*P + p holds
              the modulated feature of RoI n at flattened spatial position p,
              row k*C + c is output channel c of modulator k.  (No full-tensor
              transpose/reshape — consumers slice tiny per-RoI windows.)
    """
    N, C, P, _ = queries.shape
    K = weights.shape[0]
    HW = P * P
    KC = K * C
    total = N * HW

    # Lane tiling: cover the 128-lane columns evenly (no half-wasted last
    # tile); force >=2 tiles when there are >=2 columns so the "parallel"
    # grid axis can shard across v7x's two TensorCores.
    n128 = pl.cdiv(total, 128)
    n_tiles = pl.cdiv(n128, max(max_lane_tile // 128, 1))
    if n128 >= 2:
        n_tiles = max(n_tiles, 2)
    cols = pl.cdiv(n128, n_tiles)
    lane_tile = cols * 128
    padded = lane_tile * n_tiles

    # (C, N*HW): channels on sublanes, all RoI spatial positions on lanes.
    # Cast to bf16 *before* transpose/pad to halve wrapper-side traffic.
    q = (queries.astype(jnp.bfloat16)
         .reshape(N, C, HW).transpose(1, 0, 2).reshape(C, total))
    q = jnp.pad(q, ((0, 0), (0, padded - total)))

    w = weights.reshape(KC, C).astype(jnp.bfloat16)   # fused weight rows
    b = biases.reshape(KC, 1).astype(jnp.float32)

    cost = pl.CostEstimate(
        flops=2 * KC * C * padded,
        transcendentals=0,
        bytes_accessed=(KC * C * 2 + KC * 4 + C * padded * 2 + KC * padded * 2),
    )

    out = pl.pallas_call(
        _fused_mod_kernel,
        out_shape=jax.ShapeDtypeStruct((KC, padded), jnp.bfloat16),
        grid_spec=pltpu.PrefetchScalarGridSpec(
            num_scalar_prefetch=0,
            grid=(n_tiles,),
            in_specs=[
                pl.BlockSpec((KC, C), lambda t: (0, 0)),        # resident
                pl.BlockSpec((KC, 1), lambda t: (0, 0)),        # resident
                pl.BlockSpec((C, lane_tile), lambda t: (0, t)),
            ],
            out_specs=pl.BlockSpec((KC, lane_tile), lambda t: (0, t)),
        ),
        compiler_params=pltpu.CompilerParams(
            dimension_semantics=("parallel",)),
        cost_estimate=cost,
    )(w, b, q)
    return out   # (K*C, padded) bf16


# ------------------------------ JAX glue -------------------------------------
def bbox2roi(bbox_list):
    rois = []
    for img_id, bboxes in enumerate(bbox_list):
        idx = jnp.full((bboxes.shape[0], 1), float(img_id), dtype=bboxes.dtype)
        rois.append(jnp.concatenate([idx, bboxes[:, :4]], axis=1))
    return jnp.concatenate(rois, axis=0)


def map_roi_levels(rois, num_levels, finest_scale=56.0):
    scale = jnp.sqrt((rois[:, 3] - rois[:, 1] + 1.0) *
                     (rois[:, 4] - rois[:, 2] + 1.0))
    lvls = jnp.floor(jnp.log2(scale / finest_scale + 1e-6))
    return jnp.clip(lvls, 0, num_levels - 1).astype(jnp.int32)


def extract_roi_feats(feats, rois, lvls, strides, out_size, sample_num):
    """SingleRoIExtractor: per-RoI RoIAlign from its assigned FPN level.

    All levels are flattened (channels-last) into one (B, sum(Hl*Wl), C)
    buffer; per RoI only the 4 bilinear taps per sample point are gathered
    (no padding to the finest level, no per-RoI full-feature-map copy).

    feats : list of L arrays [B, C, Hl, Wl]
    rois  : [N, 5]  (img_idx, x1, y1, x2, y2)
    lvls  : [N]     assigned FPN level per RoI
    returns [N, C, P, P] float32
    """
    # TODO(synk): data-dependent bilinear gather stays in plain JAX
    # (irregular gather, no rectangular-tile Pallas equivalent); grouping
    # RoIs by level would remove the level-select gather entirely.
    B, C = int(feats[0].shape[0]), int(feats[0].shape[1])
    flat = jnp.concatenate(
        [f.transpose(0, 2, 3, 1).reshape(B, -1, C) for f in feats], axis=1)

    sizes = [int(f.shape[2]) * int(f.shape[3]) for f in feats]
    offsets = jnp.asarray(
        np.concatenate([[0], np.cumsum(sizes)[:-1]]).astype(np.int32))
    Hs = jnp.array([int(f.shape[2]) for f in feats], jnp.int32)
    Ws = jnp.array([int(f.shape[3]) for f in feats], jnp.int32)
    scales = jnp.array([1.0 / s for s in strides], jnp.float32)

    p = jnp.arange(out_size, dtype=jnp.float32)
    s = jnp.arange(sample_num, dtype=jnp.float32)

    def one(roi, lvl):
        b = roi[0].astype(jnp.int32)
        scale = scales[lvl]
        H, W, off = Hs[lvl], Ws[lvl], offsets[lvl]

        sx = roi[1] * scale
        sy = roi[2] * scale
        ex = roi[3] * scale
        ey = roi[4] * scale
        roi_w = jnp.maximum(ex - sx, 1.0)
        roi_h = jnp.maximum(ey - sy, 1.0)
        bin_w = roi_w / out_size
        bin_h = roi_h / out_size

        ys = (sy + p[:, None] * bin_h
              + (s[None, :] + 0.5) * bin_h / sample_num).reshape(-1)   # (P*S,)
        xs = (sx + p[:, None] * bin_w
              + (s[None, :] + 0.5) * bin_w / sample_num).reshape(-1)   # (P*S,)

        Hf = H.astype(jnp.float32)
        Wf = W.astype(jnp.float32)
        yy = ys[:, None]                       # (PS, 1)
        xx = xs[None, :]                       # (1, PS)
        valid = (yy >= -1.0) & (yy <= Hf) & (xx >= -1.0) & (xx <= Wf)
        y = jnp.clip(yy, 0.0, Hf - 1.0)
        x = jnp.clip(xx, 0.0, Wf - 1.0)
        y0 = jnp.floor(y).astype(jnp.int32)
        x0 = jnp.floor(x).astype(jnp.int32)
        y1 = jnp.minimum(y0 + 1, H - 1)
        x1 = jnp.minimum(x0 + 1, W - 1)
        ly = y - y0
        lx = x - x0
        hy = 1.0 - ly
        hx = 1.0 - lx

        def g(yi, xi):
            idx = off + yi * W + xi            # (PS, PS)
            return flat[b, idx]                # (PS, PS, C) — taps only

        v = ((hy * hx)[..., None] * g(y0, x0)
             + (hy * lx)[..., None] * g(y0, x1)
             + (ly * hx)[..., None] * g(y1, x0)
             + (ly * lx)[..., None] * g(y1, x1))
        v = jnp.where(valid[..., None], v, 0.0)            # (PS, PS, C)
        v = v.reshape(out_size, sample_num, out_size, sample_num, C)
        v = v.mean(axis=(1, 3))                             # (P, P, C)
        return v.transpose(2, 0, 1)                         # (C, P, P)

    return jax.vmap(one)(rois, lvls)                        # (N, C, P, P)


# ------------------------------ Template -------------------------------------
class TemplatePallas:
    def __init__(self, roi_out_size=7, roi_sample_num=2, channels=256,
                 strides=(4, 8, 16, 32), featmap_num=5, temple_fusion=False,
                 key=None):
        # TODO(synk): temple_fusion branch uses F.interpolate(mode='aligned_bilinear')
        # which is not a stock PyTorch mode; only the default (non-fusion) path
        # is implemented.
        assert not temple_fusion
        self.out_size = roi_out_size
        self.sample_num = roi_sample_num
        self.channels = channels
        self.strides = list(strides)
        self.featmap_num = featmap_num
        self.num_inputs = len(strides)

        key = key if key is not None else jax.random.PRNGKey(0)
        kw = jax.random.split(key, featmap_num)
        # matches init_weights(): normal_init(std=0.01), bias = 0
        self.weights = jnp.stack([
            0.01 * jax.random.normal(kw[k], (channels, channels), jnp.float32)
            for k in range(featmap_num)])
        self.biases = jnp.zeros((featmap_num, channels), jnp.float32)

    def forward(self, feats_z, gt_bboxes_z):
        rois = bbox2roi(gt_bboxes_z)                     # [N, 5]
        L = self.num_inputs
        lvls = map_roi_levels(rois, L)

        # SingleRoIExtractor: RoIAlign from the level assigned to each RoI.
        bbox_feats = extract_roi_feats(feats_z[:L], rois, lvls, self.strides,
                                       self.out_size, self.sample_num)

        # Hot path: all K fused 1x1 conv modulators for all queries (Pallas).
        # mod_flat layout: row k*C + c, column n*HW + p  (bf16, padded lanes).
        mod_flat = fpn_modulate(bbox_feats, self.weights, self.biases)

        C = self.channels
        P = self.out_size
        HW = P * P

        # Emulate the generator semantics: yield (out_ij, i, j).  Only tiny
        # (C, 7, 7) windows are sliced/upcast — no full-tensor epilogue pass.
        n_imgs = int(feats_z[0].shape[0])
        offset = 0
        for i in range(n_imgs):
            n_inst = int(gt_bboxes_z[i].shape[0])
            for j in range(n_inst):
                col = (offset + j) * HW
                out_ij = [
                    mod_flat[k * C:(k + 1) * C, col:col + HW]
                    .reshape(1, C, P, P).astype(jnp.float32)
                    for k in range(self.featmap_num)
                ]
                yield out_ij, i, j
            offset += n_inst


# --------------------------------- main ---------------------------------------
if __name__ == "__main__":
    key = jax.random.PRNGKey(0)
    B, C = 2, 32
    img_size = 64
    strides = [4, 8, 16, 32]
    featmap_num = 5

    tpl = TemplatePallas(roi_out_size=7, roi_sample_num=2, channels=C,
                         strides=strides, featmap_num=featmap_num,
                         temple_fusion=False, key=jax.random.PRNGKey(42))

    keys = jax.random.split(key, featmap_num)
    feats_z = []
    for l in range(featmap_num):
        s = strides[l] if l < len(strides) else strides[-1] * 2
        h = max(img_size // s, 1)
        feats_z.append(jax.random.normal(keys[l], (B, C, h, h), jnp.float32))

    gt_bboxes_z = [
        jnp.array([[4.0, 4.0, 40.0, 36.0],
                   [10.0, 8.0, 60.0, 50.0]], dtype=jnp.float32),
        jnp.array([[2.0, 6.0, 30.0, 28.0]], dtype=jnp.float32),
    ]

    outs = list(tpl.forward(feats_z, gt_bboxes_z))
    assert len(outs) == 3
    for out_ij, i, j in outs:
        assert len(out_ij) == featmap_num
        for o in out_ij:
            jax.block_until_ready(o)
            assert o.shape == (1, C, 7, 7)
            assert o.dtype == jnp.float32
    print("KERNEL_OK")
</pallas_src>

<mosaic_0001>
module attributes {stable_mosaic.version = 11 : i64} {
  func.func @_fused_mod_kernel(%arg0: i32, %arg1: memref<160x32xbf16, #tpu.memory_space<vmem>>, %arg2: memref<160x1xf32, #tpu.memory_space<vmem>>, %arg3: memref<32x128xbf16, #tpu.memory_space<vmem>>, %arg4: memref<160x128xbf16, #tpu.memory_space<vmem>>) attributes {dimension_semantics = [#tpu.dimension_semantics<parallel>], iteration_bounds = array<i64: 2>, scalar_prefetch = 0 : i64, scratch_operands = 0 : i64, tpu.core_type = #tpu.core_type<tc>, window_params = [{pipeline_mode = #tpu.pipeline_mode<synchronous>, transform_indices = @transform_0, window_bounds = array<i64: 160, 32>}, {pipeline_mode = #tpu.pipeline_mode<synchronous>, transform_indices = @transform_1, window_bounds = array<i64: 160, 1>}, {transform_indices = @transform_2, window_bounds = array<i64: 32, 128>}, {transform_indices = @transform_3, window_bounds = array<i64: 160, 128>}]} {
    %c0 = arith.constant 0 : index
    %c0_0 = arith.constant 0 : index
    %0 = vector.load %arg1[%c0, %c0_0] : memref<160x32xbf16, #tpu.memory_space<vmem>>, vector<160x32xbf16>
    %c0_1 = arith.constant 0 : index
    %c0_2 = arith.constant 0 : index
    %1 = vector.load %arg3[%c0_1, %c0_2] : memref<32x128xbf16, #tpu.memory_space<vmem>>, vector<32x128xbf16>
    %cst = arith.constant dense<0.000000e+00> : vector<160x128xf32>
    %2 = tpu.matmul %0, %1, %cst {dimension_numbers = #tpu.dot_dimension_numbers<[1], [0], [0], [1], [0, 0, 1, 1], [], []>} : vector<160x32xbf16>, vector<32x128xbf16>, vector<160x128xf32> -> vector<160x128xf32>
    %c0_3 = arith.constant 0 : index
    %c0_4 = arith.constant 0 : index
    %3 = vector.load %arg2[%c0_3, %c0_4] : memref<160x1xf32, #tpu.memory_space<vmem>>, vector<160x1xf32>
    %4 = vector.broadcast %3 : vector<160x1xf32> to vector<160x128xf32>
    %5 = arith.addf %2, %4 : vector<160x128xf32>
    %6 = arith.truncf %5 : vector<160x128xf32> to vector<160x128xbf16>
    %c0_5 = arith.constant 0 : index
    %c0_6 = arith.constant 0 : index
    %7 = vector.load %arg4[%c0_5, %c0_6] : memref<160x128xbf16, #tpu.memory_space<vmem>>, vector<160x128xbf16>
    tpu.vector_store %arg4[%c0_5, %c0_6], %6 {strides = array<i32>} : memref<160x128xbf16, #tpu.memory_space<vmem>>, vector<160x128xbf16>,
    return
  }
  func.func @transform_0(%arg0: i32) -> (i32, i32) {
    %c0_i32 = arith.constant 0 : i32
    %c0_i32_0 = arith.constant 0 : i32
    %c0_i32_1 = arith.constant 0 : i32
    return %c0_i32, %c0_i32_0 : i32, i32
  }
  func.func @transform_1(%arg0: i32) -> (i32, i32) {
    %c0_i32 = arith.constant 0 : i32
    %c0_i32_0 = arith.constant 0 : i32
    %c0_i32_1 = arith.constant 0 : i32
    return %c0_i32, %c0_i32_0 : i32, i32
  }
  func.func @transform_2(%arg0: i32) -> (i32, i32) {
    %c0_i32 = arith.constant 0 : i32
    %c0_i32_0 = arith.constant 0 : i32
    return %c0_i32, %arg0 : i32, i32
  }
  func.func @transform_3(%arg0: i32) -> (i32, i32) {
    %c0_i32 = arith.constant 0 : i32
    %c0_i32_0 = arith.constant 0 : i32
    return %c0_i32, %arg0 : i32, i32
  }
}

</mosaic_0001>

<llo_original>
// kernel: tpu_custom_call.1
$region0: #{tpu_custom_call.1}
  #allocation0 [shape = 'u32[]', space=smem, size = 0x4, offset = 0x4, fixed_abs, tag = 'smem constant byte address 0x4 - core index']
  #allocation1 [shape = 'u32[72,128]{1,0:T(1,128)}', space=vmem, size = 0x9000, scoped, tag = 'internal scratch']
  %s0 = inlined_call_operand.vmem [shape: bf16[160,32], index: 0, kind: input, shape index: {}]
  %s1 = inlined_call_operand.vmem [shape: f32[160,1], index: 1, kind: input, shape index: {}]
  %s2 = inlined_call_operand.vmem [shape: bf16[32,256], index: 2, kind: input, shape index: {}]
  %s3 = inlined_call_operand.hbm [shape: bf16[160,256], index: 3, kind: output, shape index: {}]
  %s4 = sld [smem:[#allocation0]]
  $region86: #{tpu_custom_call.1} parent=0
    _
  %s6 = ssub.s32 1, %s4
  %s7 = scalar_select 0, %s6, %s4
  $region1: #{tpu_custom_call.1} parent=0
    #allocation2 [shape = 'u8[16384]{0}', space=vmem, size = 0x4000, scoped, tag = 'input window, operand 2']
    #allocation3 [shape = 'u8[81920]{0}', space=vmem, size = 0x14000, scoped, tag = 'output window, operand 0']
    #allocation4 [shape = 's32[2]{0}', space=sflag, size = 0x8, scoped, tag = 'scoped memory for tpu_custom_call.1']
    %8 = vsyncpa [#allocation4], 0
    %s9 = scalar_lea.sflag [#allocation4], 1
    %10 = vsyncpa %s9, 0
    loop: start=0, step=1, limit=4
    $region2: #{tpu_custom_call.1} parent=1 // loop_pre_header
      _
    $region3: #{tpu_custom_call.1} parent=1 // loop_header
      %s12 = sphi 0, %s16
      %p13 = scmp.ge.s32.totalorder %s12, 4
      %s20 = sphi 0, %s20
      %s22 = sphi 0, %s20
      %s23 = sphi 0, %s22
      %s37 = sphi 0, %s23
      %s41 = sphi 0, %s41
      %s43 = sphi 0, %s41
      %s44 = sphi 0, %s43
      %s58 = sphi 0, %s44
      %s64 = sphi 0, %s66
      %s67 = sphi 0, %s64
      %s68 = sphi 0, %s67
      %s84 = sphi 0, %s68
      %s90 = sphi 0, %s92
      %s93 = sphi 0, %s90
      %s94 = sphi 0, %s93
      %s110 = sphi 0, %s94
    $region4: #{tpu_custom_call.1} parent=1 // loop_header_branch
      %15 = sbr.rel (%p13) target = $region8
    $region5: #{tpu_custom_call.1} parent=1 // loop_body
      %s17 = ssub.s32 %s12, 1
      %s18 = ssub.s32 %s12, 2
      %s19 = sadd.s32 %s12, 1
      %s21 = sadd.s32 %s20, 1
      %p24 = scmp.eq.s32.totalorder %s12, 1
      %p25 = scmp.ne.s32.totalorder %s20, %s22
      %p26 = scmp.eq.s32.totalorder %s12, 0
      %p27 = por %p25, %p26
      %p28 = scmp.ne.s32.totalorder %s20, %s22
      %p29 = scmp.eq.s32.totalorder %s17, 1
      %p30 = por %p28, %p29
      %p31 = scmp.ne.s32.totalorder %s22, %s23
      %p32 = scmp.eq.s32.totalorder %s17, 0
      %p33 = por %p31, %p32
      %p34 = scmp.ne.s32.totalorder %s22, %s23
      %p35 = scmp.eq.s32.totalorder %s18, 1
      %p36 = por %p34, %p35
      %p38 = scmp.ne.s32.totalorder %s23, %s37
      %p39 = scmp.eq.s32.totalorder %s18, 0
      %p40 = por %p38, %p39
      %s42 = sadd.s32 %s41, 1
      %p45 = scmp.eq.s32.totalorder %s12, 1
      %p46 = scmp.ne.s32.totalorder %s41, %s43
      %p47 = scmp.eq.s32.totalorder %s12, 0
      %p48 = por %p46, %p47
      %p49 = scmp.ne.s32.totalorder %s41, %s43
      %p50 = scmp.eq.s32.totalorder %s17, 1
      %p51 = por %p49, %p50
      %p52 = scmp.ne.s32.totalorder %s43, %s44
      %p53 = scmp.eq.s32.totalorder %s17, 0
      %p54 = por %p52, %p53
      %p55 = scmp.ne.s32.totalorder %s43, %s44
      %p56 = scmp.eq.s32.totalorder %s18, 1
      %p57 = por %p55, %p56
      %p59 = scmp.ne.s32.totalorder %s44, %s58
      %p60 = scmp.eq.s32.totalorder %s18, 0
      %p61 = por %p59, %p60
      %s62 = ssub.s32 %s12, %s19
      %p63 = scmp.eq.s32.totalorder %s62, 0
      %s65 = sadd.s32 %s64, 1
      %s66 = scalar_select %p63, %s64, %s65
      %p69 = pneg %p63
      %p70 = scmp.eq.s32.totalorder %s12, 1
      %p71 = por %p69, %p70
      %p72 = scmp.ne.s32.totalorder %s64, %s67
      %p73 = scmp.eq.s32.totalorder %s12, 0
      %p74 = por %p72, %p73
      %p75 = scmp.ne.s32.totalorder %s64, %s67
      %p76 = scmp.eq.s32.totalorder %s17, 1
      %p77 = por %p75, %p76
      %p78 = scmp.ne.s32.totalorder %s67, %s68
      %p79 = scmp.eq.s32.totalorder %s17, 0
      %p80 = por %p78, %p79
      %p81 = scmp.ne.s32.totalorder %s67, %s68
      %p82 = scmp.eq.s32.totalorder %s18, 1
      %p83 = por %p81, %p82
      %p85 = scmp.ne.s32.totalorder %s68, %s84
      %p86 = scmp.eq.s32.totalorder %s18, 0
      %p87 = por %p85, %p86
      %s88 = ssub.s32 %s12, %s19
      %p89 = scmp.eq.s32.totalorder %s88, 0
      %s91 = sadd.s32 %s90, 1
      %s92 = scalar_select %p89, %s90, %s91
      %p95 = pneg %p89
      %p96 = scmp.eq.s32.totalorder %s12, 1
      %p97 = por %p95, %p96
      %p98 = scmp.ne.s32.totalorder %s90, %s93
      %p99 = scmp.eq.s32.totalorder %s12, 0
      %p100 = por %p98, %p99
      %p101 = scmp.ne.s32.totalorder %s90, %s93
      %p102 = scmp.eq.s32.totalorder %s17, 1
      %p103 = por %p101, %p102
      %p104 = scmp.ne.s32.totalorder %s93, %s94
      %p105 = scmp.eq.s32.totalorder %s17, 0
      %p106 = por %p104, %p105
      %p107 = scmp.ne.s32.totalorder %s93, %s94
      %p108 = scmp.eq.s32.totalorder %s18, 1
      %p109 = por %p107, %p108
      %p111 = scmp.ne.s32.totalorder %s94, %s110
      %p112 = scmp.eq.s32.totalorder %s18, 0
      %p113 = por %p111, %p112
      %p114 = scmp.le.s32.totalorder 1, %s12
      %p115 = scmp.lt.s32.totalorder %s12, 3
      %p116 = pnand %p114, %p115
      %p117 = pneg %p116
      // Predicated region
      $region9: #{tpu_custom_call.1} parent=5 // pred_check
        _
      $region10: #{tpu_custom_call.1} parent=5 // pred_check_branch
        %119 = sbr.rel (%p116) target = $region12
      $region11: #{tpu_custom_call.1} parent=5 // pred_region
        %s120 = ssub.s32 %s12, 1
        // Predicated region
        $region13: #{tpu_custom_call.1} parent=11 // pred_check
          %p121 = pneg %p33
        $region14: #{tpu_custom_call.1} parent=11 // pred_check_branch
          %123 = sbr.rel (%p121) target = $region16
        $region15: #{tpu_custom_call.1} parent=11 // pred_region
          _
        $region16: #{tpu_custom_call.1} parent=11 // pred_fallthru
          _
        // Predicated region
        $region17: #{tpu_custom_call.1} parent=11 // pred_check
          %p124 = pneg %p54
        $region18: #{tpu_custom_call.1} parent=11 // pred_check_branch
          %126 = sbr.rel (%p124) target = $region20
        $region19: #{tpu_custom_call.1} parent=11 // pred_region
          _
        $region20: #{tpu_custom_call.1} parent=11 // pred_fallthru
          _
      $region12: #{tpu_custom_call.1} parent=5 // pred_fallthru
        _
      %p127 = scmp.lt.s32.totalorder %s12, 2
      // Predicated region
      $region21: #{tpu_custom_call.1} parent=5 // pred_check
        %p128 = pneg %p127
      $region22: #{tpu_custom_call.1} parent=5 // pred_check_branch
        %130 = sbr.rel (%p128) target = $region24
      $region23: #{tpu_custom_call.1} parent=5 // pred_region
        // Predicated region
        $region25: #{tpu_custom_call.1} parent=23 // pred_check
          %p131 = pneg %p74
        $region26: #{tpu_custom_call.1} parent=23 // pred_check_branch
          %133 = sbr.rel (%p131) target = $region28
        $region27: #{tpu_custom_call.1} parent=23 // pred_region
          %s134 = sand.u32 %s64, 1
          %s135 = sand.u32 %s64, 1
          %s136 = smul.addr %s135, 16
          %s137 = scalar_lea.vmem [#allocation2], %s136
          %s138 = smul.addr %s12, 4
          %s139 = scalar_lea.vmem %s2, %s138
          // Predicated region
          $region29: #{tpu_custom_call.1} parent=27 // pred_check
            _
          $region30: #{tpu_custom_call.1} parent=27 // pred_check_branch
            %141 = sbr.rel (0) target = $region32
          $region31: #{tpu_custom_call.1} parent=27 // pred_region
            // Predicated region
            $region33: #{tpu_custom_call.1} parent=31 // pred_check
              _
            $region34: #{tpu_custom_call.1} parent=31 // pred_check_branch
              %143 = sbr.rel target = $region36
            $region35: #{tpu_custom_call.1} parent=31 // pred_region
              // Predicated region
              $region48: #{tpu_custom_call.1} parent=35 // pred_check
                _
              $region49: #{tpu_custom_call.1} parent=35 // pred_check_branch
                %165 = sbr.rel (0) target = $region51
              $region50: #{tpu_custom_call.1} parent=35 // pred_region
                loop: start=0, step=1, limit=1
                $region52: #{tpu_custom_call.1} parent=50 // loop_pre_header
                  _
                $region53: #{tpu_custom_call.1} parent=50 // loop_header
                  %s167 = sphi 0, %s171
                  %p168 = scmp.ge.s32.totalorder %s167, 1
                  %s172 = sphi %s139, %s139
                  %s173 = sphi %s137, %s137
                $region54: #{tpu_custom_call.1} parent=50 // loop_header_branch
                  %170 = sbr.rel (%p168) target = $region58
                $region55: #{tpu_custom_call.1} parent=50 // loop_body
                  _
                $region56: #{tpu_custom_call.1} parent=50 // loop_footer
                  %s171 = sadd.s32 1, %s167
                $region57: #{tpu_custom_call.1} parent=50 // loop_footer_branch
                  %166 = sbr.rel target = $region53
                $region58: #{tpu_custom_call.1} parent=50 // loop_exit
                  _
                %s175 = ssub.s32 16, 1
                loop: start=0, step=1, limit=1
                $region59: #{tpu_custom_call.1} parent=50 // loop_pre_header
                  _
                $region60: #{tpu_custom_call.1} parent=50 // loop_header
                  %s177 = sphi 0, %s181
                  %p178 = scmp.ge.s32.totalorder %s177, 1
                  %s182 = sphi %s139, %s139
                  %s183 = sphi %s137, %s137
                $region61: #{tpu_custom_call.1} parent=50 // loop_header_branch
                  %180 = sbr.rel (%p178) target = $region65
                $region62: #{tpu_custom_call.1} parent=50 // loop_body
                  %v184 = vld [vmem:[%s182] sm:%s175]
                  %185 = vst [vmem:[%s183] sm:%s175] %v184
                  %v186 = vld [vmem:[%s182 + $0x8] sm:%s175]
                  %187 = vst [vmem:[%s183 + $0x4] sm:%s175] %v186
                  %v188 = vld [vmem:[%s182 + $0x10] sm:%s175]
                  %189 = vst [vmem:[%s183 + $0x8] sm:%s175] %v188
                  %v190 = vld [vmem:[%s182 + $0x18] sm:%s175]
                  %191 = vst [vmem:[%s183 + $0xc] sm:%s175] %v190
                $region63: #{tpu_custom_call.1} parent=50 // loop_footer
                  %s181 = sadd.s32 1, %s177
                $region64: #{tpu_custom_call.1} parent=50 // loop_footer_branch
                  %176 = sbr.rel target = $region60
                $region65: #{tpu_custom_call.1} parent=50 // loop_exit
                  _
              $region51: #{tpu_custom_call.1} parent=35 // pred_fallthru
                _
            $region36: #{tpu_custom_call.1} parent=31 // pred_fallthru
              _
            // Predicated region
            $region37: #{tpu_custom_call.1} parent=31 // pred_check
              _
            $region38: #{tpu_custom_call.1} parent=31 // pred_check_branch
              %145 = sbr.rel (0) target = $region40
            $region39: #{tpu_custom_call.1} parent=31 // pred_region
              %s147 = ssub.s32 16, 1
              loop: start=0, step=1, limit=1
              $region41: #{tpu_custom_call.1} parent=39 // loop_pre_header
                _
              $region42: #{tpu_custom_call.1} parent=39 // loop_header
                %s149 = sphi 0, %s153
                %p150 = scmp.ge.s32.totalorder %s149, 1
                %s154 = sphi %s139, %s139
                %s155 = sphi %s137, %s137
              $region43: #{tpu_custom_call.1} parent=39 // loop_header_branch
                %152 = sbr.rel (%p150) target = $region47
              $region44: #{tpu_custom_call.1} parent=39 // loop_body
                %v156 = vld [vmem:[%s154] sm:%s147]
                %157 = vst [vmem:[%s155] sm:%s147] %v156
                %v158 = vld [vmem:[%s154 + $0x8] sm:%s147]
                %159 = vst [vmem:[%s155 + $0x4] sm:%s147] %v158
                %v160 = vld [vmem:[%s154 + $0x10] sm:%s147]
                %161 = vst [vmem:[%s155 + $0x8] sm:%s147] %v160
                %v162 = vld [vmem:[%s154 + $0x18] sm:%s147]
                %163 = vst [vmem:[%s155 + $0xc] sm:%s147] %v162
              $region45: #{tpu_custom_call.1} parent=39 // loop_footer
                %s153 = sadd.s32 1, %s149
              $region46: #{tpu_custom_call.1} parent=39 // loop_footer_branch
                %148 = sbr.rel target = $region42
              $region47: #{tpu_custom_call.1} parent=39 // loop_exit
                _
            $region40: #{tpu_custom_call.1} parent=31 // pred_fallthru
              _
          $region32: #{tpu_custom_call.1} parent=27 // pred_fallthru
            _
          %192 = vnop
        $region28: #{tpu_custom_call.1} parent=23 // pred_fallthru
          _
      $region24: #{tpu_custom_call.1} parent=5 // pred_fallthru
        _
      %p193 = scmp.le.s32.totalorder 1, %s12
      %p194 = scmp.lt.s32.totalorder %s12, 3
      %p195 = pnand %p193, %p194
      %p196 = pneg %p195
      // Predicated region
      $region66: #{tpu_custom_call.1} parent=5 // pred_check
        _
      $region67: #{tpu_custom_call.1} parent=5 // pred_check_branch
        %198 = sbr.rel (%p195) target = $region69
      $region68: #{tpu_custom_call.1} parent=5 // pred_region
        %s199 = ssub.s32 %s12, 1
        %s200 = sand.u32 %s67, 1
        %s201 = sand.u32 %s67, 1
        %s202 = smul.addr %s201, 16
        %s203 = scalar_lea.vmem [#allocation2], %s202
        // Predicated region
        $region70: #{tpu_custom_call.1} parent=68 // pred_check
          %p204 = pneg %p80
        $region71: #{tpu_custom_call.1} parent=68 // pred_check_branch
          %206 = sbr.rel (%p204) target = $region73
        $region72: #{tpu_custom_call.1} parent=68 // pred_region
          _
        $region73: #{tpu_custom_call.1} parent=68 // pred_fallthru
          _
        %p207 = pneg %p33
        %p208 = pneg %p30
        %p209 = pneg %p54
        %p210 = pneg %p51
        %s211 = sand.u32 %s67, 1
        %s212 = sand.u32 %s67, 1
        %s213 = smul.addr %s212, 16
        %s214 = scalar_lea.vmem [#allocation2], %s213
        %p215 = pneg %p80
        %p216 = pneg %p77
        %p217 = pneg %p106
        %p218 = pneg %p103
        %s219 = sand.u32 %s93, 1
        %s220 = scalar_lea.sflag [#allocation4], %s219
        %s221 = sand.u32 %s93, 1
        %s222 = smul.addr %s221, 80
        %s223 = scalar_lea.vmem [#allocation3], %s222
        %v225 = vld [vmem:[%s0] sm:$0xf]
        %v226 = vld [vmem:[%s0 + $0x4] sm:$0xf]
        %v227 = vld [vmem:[%s0 + $0x8] sm:$0xf]
        %v228 = vld [vmem:[%s0 + $0xc] sm:$0xf]
        %v229 = vld [vmem:[%s0 + $0x10] sm:$0xf]
        %v230 = vld [vmem:[%s0 + $0x14] sm:$0xf]
        %v231 = vld [vmem:[%s0 + $0x18] sm:$0xf]
        %v232 = vld [vmem:[%s0 + $0x1c] sm:$0xf]
        %v233 = vld [vmem:[%s0 + $0x20] sm:$0xf]
        %v234 = vld [vmem:[%s0 + $0x24] sm:$0xf]
        %v235 = vld [vmem:[%s0 + $0x28] sm:$0xf]
        %v236 = vld [vmem:[%s0 + $0x2c] sm:$0xf]
        %v237 = vld [vmem:[%s0 + $0x30] sm:$0xf]
        %v238 = vld [vmem:[%s0 + $0x34] sm:$0xf]
        %v239 = vld [vmem:[%s0 + $0x38] sm:$0xf]
        %v240 = vld [vmem:[%s0 + $0x3c] sm:$0xf]
        %v241 = vld [vmem:[%s0 + $0x40] sm:$0xf]
        %v242 = vld [vmem:[%s0 + $0x44] sm:$0xf]
        %v243 = vld [vmem:[%s0 + $0x48] sm:$0xf]
        %v244 = vld [vmem:[%s0 + $0x4c] sm:$0xf]
        %v245 = vld [vmem:[%s203] sm:$0xf]
        %v246 = vld [vmem:[%s203 + $0x4] sm:$0xf]
        %v247 = vld [vmem:[%s203 + $0x8] sm:$0xf]
        %v248 = vld [vmem:[%s203 + $0xc] sm:$0xf]
        %v249 = vld [vmem:[%s1] sm:$0xff]
        %v250 = vld [vmem:[%s1 + $0x8] sm:$0xff]
        %v251 = vld [vmem:[%s1 + $0x10] sm:$0xff]
        %v252 = vld [vmem:[%s1 + $0x18] sm:$0xff]
        %v253 = vld [vmem:[%s1 + $0x20] sm:$0xff]
        %v254 = vld [vmem:[%s1 + $0x28] sm:$0xff]
        %v255 = vld [vmem:[%s1 + $0x30] sm:$0xff]
        %v256 = vld [vmem:[%s1 + $0x38] sm:$0xff]
        %v257 = vld [vmem:[%s1 + $0x40] sm:$0xff]
        %v258 = vld [vmem:[%s1 + $0x48] sm:$0xff]
        %v259 = vld [vmem:[%s1 + $0x50] sm:$0xff]
        %v260 = vld [vmem:[%s1 + $0x58] sm:$0xff]
        %v261 = vld [vmem:[%s1 + $0x60] sm:$0xff]
        %v262 = vld [vmem:[%s1 + $0x68] sm:$0xff]
        %v263 = vld [vmem:[%s1 + $0x70] sm:$0xff]
        %v264 = vld [vmem:[%s1 + $0x78] sm:$0xff]
        %v265 = vld [vmem:[%s1 + $0x80] sm:$0xff]
        %v266 = vld [vmem:[%s1 + $0x88] sm:$0xff]
        %v267 = vld [vmem:[%s1 + $0x90] sm:$0xff]
        %v268 = vld [vmem:[%s1 + $0x98] sm:$0xff]
        %270 = vset.pattern.permute.xlu0 0
        %271 = vperm.xlu0 %270, %v249
        %v272 = vpop.permute.xlu0 %271
        %275 = vset.pattern.permute.xlu0 0
        %276 = vperm.xlu0 %275, %v250
        %v277 = vpop.permute.xlu0 %276
        %280 = vset.pattern.permute.xlu0 0
        %281 = vperm.xlu0 %280, %v251
        %v282 = vpop.permute.xlu0 %281
        %285 = vset.pattern.permute.xlu0 0
        %286 = vperm.xlu0 %285, %v252
        %v287 = vpop.permute.xlu0 %286
        %290 = vset.pattern.permute.xlu0 0
        %291 = vperm.xlu0 %290, %v253
        %v292 = vpop.permute.xlu0 %291
        %295 = vset.pattern.permute.xlu0 0
        %296 = vperm.xlu0 %295, %v254
        %v297 = vpop.permute.xlu0 %296
        %300 = vset.pattern.permute.xlu0 0
        %301 = vperm.xlu0 %300, %v255
        %v302 = vpop.permute.xlu0 %301
        %305 = vset.pattern.permute.xlu0 0
        %306 = vperm.xlu0 %305, %v256
        %v307 = vpop.permute.xlu0 %306
        %310 = vset.pattern.permute.xlu0 0
        %311 = vperm.xlu0 %310, %v257
        %v312 = vpop.permute.xlu0 %311
        %315 = vset.pattern.permute.xlu0 0
        %316 = vperm.xlu0 %315, %v258
        %v317 = vpop.permute.xlu0 %316
        %320 = vset.pattern.permute.xlu0 0
        %321 = vperm.xlu0 %320, %v259
        %v322 = vpop.permute.xlu0 %321
        %325 = vset.pattern.permute.xlu0 0
        %326 = vperm.xlu0 %325, %v260
        %v327 = vpop.permute.xlu0 %326
        %330 = vset.pattern.permute.xlu0 0
        %331 = vperm.xlu0 %330, %v261
        %v332 = vpop.permute.xlu0 %331
        %335 = vset.pattern.permute.xlu0 0
        %336 = vperm.xlu0 %335, %v262
        %v337 = vpop.permute.xlu0 %336
        %340 = vset.pattern.permute.xlu0 0
        %341 = vperm.xlu0 %340, %v263
        %v342 = vpop.permute.xlu0 %341
        %345 = vset.pattern.permute.xlu0 0
        %346 = vperm.xlu0 %345, %v264
        %v347 = vpop.permute.xlu0 %346
        %350 = vset.pattern.permute.xlu0 0
        %351 = vperm.xlu0 %350, %v265
        %v352 = vpop.permute.xlu0 %351
        %355 = vset.pattern.permute.xlu0 0
        %356 = vperm.xlu0 %355, %v266
        %v357 = vpop.permute.xlu0 %356
        %360 = vset.pattern.permute.xlu0 0
        %361 = vperm.xlu0 %360, %v267
        %v362 = vpop.permute.xlu0 %361
        %365 = vset.pattern.permute.xlu0 0
        %366 = vperm.xlu0 %365, %v268
        %v367 = vpop.permute.xlu0 %366
        %v389 = vunpack.c.l.b16 %v225
        %v390 = vunpack.c.l.b16 %v226
        %v391 = vunpack.c.l.b16 %v227
        %v392 = vunpack.c.l.b16 %v228
        %v393 = vunpack.c.l.b16 %v229
        %v394 = vunpack.c.l.b16 %v230
        %v395 = vunpack.c.l.b16 %v231
        %v396 = vunpack.c.l.b16 %v232
        %v397 = vunpack.c.l.b16 %v233
        %v398 = vunpack.c.l.b16 %v234
        %v399 = vunpack.c.l.b16 %v235
        %v400 = vunpack.c.l.b16 %v236
        %v401 = vunpack.c.l.b16 %v237
        %v402 = vunpack.c.l.b16 %v238
        %v403 = vunpack.c.l.b16 %v239
        %v404 = vunpack.c.l.b16 %v240
        %v405 = vunpack.c.l.b16 %v241
        %v406 = vunpack.c.l.b16 %v242
        %v407 = vunpack.c.l.b16 %v243
        %v408 = vunpack.c.l.b16 %v244
        %v409 = vpack.c.b16 %v390, %v389
        %v410 = vpack.c.b16 %v392, %v391
        %v411 = vpack.c.b16 %v394, %v393
        %v412 = vpack.c.b16 %v396, %v395
        %v413 = vpack.c.b16 %v398, %v397
        %v414 = vpack.c.b16 %v400, %v399
        %v415 = vpack.c.b16 %v402, %v401
        %v416 = vpack.c.b16 %v404, %v403
        %v417 = vpack.c.b16 %v406, %v405
        %v418 = vpack.c.b16 %v408, %v407
        %v423 = vunpack.c.l.b16 %v245
        %v424 = vunpack.c.l.b16 %v246
        %v425 = vunpack.c.l.b16 %v247
        %v426 = vunpack.c.l.b16 %v248
        %v427 = vpack.c.b16 %v424, %v423
        %v428 = vpack.c.b16 %v426, %v425
        %vm431 = vcmask 261120
        %v433 = vsel %vm431, %v409, 0
        %v436 = vsel %vm431, %v410, 0
        %v439 = vsel %vm431, %v411, 0
        %v442 = vsel %vm431, %v412, 0
        %v445 = vsel %vm431, %v413, 0
        %v448 = vsel %vm431, %v414, 0
        %v451 = vsel %vm431, %v415, 0
        %v454 = vsel %vm431, %v416, 0
        %v457 = vsel %vm431, %v417, 0
        %v460 = vsel %vm431, %v418, 0
        %462 = vmatpush.bf16.msra.mxu0 0
        %463 = vmatpush.bf16.msra.mxu0 0
        %464 = vmatpush.bf16.msra.mxu0 0
        %465 = vmatpush.bf16.msra.mxu0 0
        %466 = vmatpush.bf16.msra.mxu0 0
        %467 = vmatpush.bf16.msra.mxu0 0
        %468 = vmatpush.bf16.msra.mxu0 %v428
        %469 = vmatpush.bf16.msra.mxu0 %v427
        %470 = vmatmul.bf16.gmra.mxu0 %v433
        %v471 = vpop.f32.mrf.mxu0
        %v472 = vadd.f32 %v272, %v471
        %v473 = vpop.f32.mrf.mxu0
        %v474 = vadd.f32 %v277, %v473
        %475 = vmatmul.bf16.gmra.mxu0 %v436
        %v476 = vpop.f32.mrf.mxu0
        %v477 = vadd.f32 %v282, %v476
        %v478 = vpop.f32.mrf.mxu0
        %v479 = vadd.f32 %v287, %v478
        %480 = vmatmul.bf16.gmra.mxu0 %v439
        %v481 = vpop.f32.mrf.mxu0
        %v482 = vadd.f32 %v292, %v481
        %v483 = vpop.f32.mrf.mxu0
        %v484 = vadd.f32 %v297, %v483
        %485 = vmatmul.bf16.gmra.mxu0 %v442
        %v486 = vpop.f32.mrf.mxu0
        %v487 = vadd.f32 %v302, %v486
        %v488 = vpop.f32.mrf.mxu0
        %v489 = vadd.f32 %v307, %v488
        %490 = vmatmul.bf16.gmra.mxu0 %v445
        %v491 = vpop.f32.mrf.mxu0
        %v492 = vadd.f32 %v312, %v491
        %v493 = vpop.f32.mrf.mxu0
        %v494 = vadd.f32 %v317, %v493
        %495 = vmatmul.bf16.gmra.mxu0 %v448
        %v496 = vpop.f32.mrf.mxu0
        %v497 = vadd.f32 %v322, %v496
        %v498 = vpop.f32.mrf.mxu0
        %v499 = vadd.f32 %v327, %v498
        %500 = vmatmul.bf16.gmra.mxu0 %v451
        %v501 = vpop.f32.mrf.mxu0
        %v502 = vadd.f32 %v332, %v501
        %v503 = vpop.f32.mrf.mxu0
        %v504 = vadd.f32 %v337, %v503
        %505 = vmatmul.bf16.gmra.mxu0 %v454
        %v506 = vpop.f32.mrf.mxu0
        %v507 = vadd.f32 %v342, %v506
        %v508 = vpop.f32.mrf.mxu0
        %v509 = vadd.f32 %v347, %v508
        %510 = vmatmul.bf16.gmra.mxu0 %v457
        %v511 = vpop.f32.mrf.mxu0
        %v512 = vadd.f32 %v352, %v511
        %v513 = vpop.f32.mrf.mxu0
        %v514 = vadd.f32 %v357, %v513
        %515 = vmatmul.bf16.gmra.mxu0 %v460
        %v516 = vpop.f32.mrf.mxu0
        %v517 = vadd.f32 %v362, %v516
        %v518 = vpop.f32.mrf.mxu0
        %v519 = vadd.f32 %v367, %v518
        %520 = vdwg.mxu0
        %v521 = vpack.c.bf16 %v472, %v472
        %v522 = vpack.c.bf16 %v474, %v474
        %v523 = vpack.c.bf16 %v477, %v477
        %v524 = vpack.c.bf16 %v479, %v479
        %v525 = vpack.c.bf16 %v482, %v482
        %v526 = vpack.c.bf16 %v484, %v484
        %v527 = vpack.c.bf16 %v487, %v487
        %v528 = vpack.c.bf16 %v489, %v489
        %v529 = vpack.c.bf16 %v492, %v492
        %v530 = vpack.c.bf16 %v494, %v494
        %v531 = vpack.c.bf16 %v497, %v497
        %v532 = vpack.c.bf16 %v499, %v499
        %v533 = vpack.c.bf16 %v502, %v502
        %v534 = vpack.c.bf16 %v504, %v504
        %v535 = vpack.c.bf16 %v507, %v507
        %v536 = vpack.c.bf16 %v509, %v509
        %v537 = vpack.c.bf16 %v512, %v512
        %v538 = vpack.c.bf16 %v514, %v514
        %v539 = vpack.c.bf16 %v517, %v517
        %v540 = vpack.c.bf16 %v519, %v519
        %541 = vst [vmem:[%s223] sm:$0xf] %v521
        %542 = vst [vmem:[%s223 + $0x4] sm:$0xf] %v522
        %543 = vst [vmem:[%s223 + $0x8] sm:$0xf] %v523
        %544 = vst [vmem:[%s223 + $0xc] sm:$0xf] %v524
        %545 = vst [vmem:[%s223 + $0x10] sm:$0xf] %v525
        %546 = vst [vmem:[%s223 + $0x14] sm:$0xf] %v526
        %547 = vst [vmem:[%s223 + $0x18] sm:$0xf] %v527
        %548 = vst [vmem:[%s223 + $0x1c] sm:$0xf] %v528
        %549 = vst [vmem:[%s223 + $0x20] sm:$0xf] %v529
        %550 = vst [vmem:[%s223 + $0x24] sm:$0xf] %v530
        %551 = vst [vmem:[%s223 + $0x28] sm:$0xf] %v531
        %552 = vst [vmem:[%s223 + $0x2c] sm:$0xf] %v532
        %553 = vst [vmem:[%s223 + $0x30] sm:$0xf] %v533
        %554 = vst [vmem:[%s223 + $0x34] sm:$0xf] %v534
        %555 = vst [vmem:[%s223 + $0x38] sm:$0xf] %v535
        %556 = vst [vmem:[%s223 + $0x3c] sm:$0xf] %v536
        %557 = vst [vmem:[%s223 + $0x40] sm:$0xf] %v537
        %558 = vst [vmem:[%s223 + $0x44] sm:$0xf] %v538
        %559 = vst [vmem:[%s223 + $0x48] sm:$0xf] %v539
        %560 = vst [vmem:[%s223 + $0x4c] sm:$0xf] %v540
        %s561 = sand.u32 %s93, 1
        %s562 = scalar_lea.sflag [#allocation4], %s561
        %s563 = sand.u32 %s93, 1
        %s564 = smul.addr %s563, 80
        %s565 = scalar_lea.vmem [#allocation3], %s564
        // Predicated region
        $region74: #{tpu_custom_call.1} parent=68 // pred_check
          %p566 = pneg %p103
        $region75: #{tpu_custom_call.1} parent=68 // pred_check_branch
          %568 = sbr.rel (%p566) target = $region77
        $region76: #{tpu_custom_call.1} parent=68 // pred_region
          %570 = vsyncadd %s562, 0
          %s571 = smul.addr %s17, 4
          %s572 = scalar_lea.hbm %s3, %s571
          %s573 = sshll.u32 %s565, 4
          %s574 = int_to_ptr.vmem [resolvable:$true] %s573
          %s575 = sshll.u32 %s572, 4
          %s576 = int_to_ptr.hbm [resolvable:$true] %s575
          %581 = dma.vmem_to_hbm [thread:$0]  %s574, 1280, %s576, %s562, 64, 128, 4
        $region77: #{tpu_custom_call.1} parent=68 // pred_fallthru
          _
      $region69: #{tpu_custom_call.1} parent=5 // pred_fallthru
        _
      %p582 = scmp.le.s32.totalorder 2, %s12
      // Predicated region
      $region78: #{tpu_custom_call.1} parent=5 // pred_check
        %p583 = pneg %p582
      $region79: #{tpu_custom_call.1} parent=5 // pred_check_branch
        %585 = sbr.rel (%p583) target = $region81
      $region80: #{tpu_custom_call.1} parent=5 // pred_region
        %s586 = ssub.s32 %s12, 2
        // Predicated region
        $region82: #{tpu_custom_call.1} parent=80 // pred_check
          %p587 = pneg %p109
        $region83: #{tpu_custom_call.1} parent=80 // pred_check_branch
          %589 = sbr.rel (%p587) target = $region85
        $region84: #{tpu_custom_call.1} parent=80 // pred_region
          %s590 = sand.u32 %s94, 1
          %s591 = scalar_lea.sflag [#allocation4], %s590
          %s592 = sand.u32 %s94, 1
          %s593 = smul.addr %s592, 80
          %s594 = scalar_lea.vmem [#allocation3], %s593
          %596 = dma.done %s591, 1280
        $region85: #{tpu_custom_call.1} parent=80 // pred_fallthru
          _
      $region81: #{tpu_custom_call.1} parent=5 // pred_fallthru
        _
    $region6: #{tpu_custom_call.1} parent=1 // loop_footer
      %s16 = sadd.s32 1, %s12
    $region7: #{tpu_custom_call.1} parent=1 // loop_footer_branch
      %11 = sbr.rel target = $region3
    $region8: #{tpu_custom_call.1} parent=1 // loop_exit
      _
    %597 = vsyncpa [#allocation4], 1
    %s598 = scalar_lea.sflag [#allocation4], 1
    %599 = vsyncpa %s598, 1

</llo_original>
